<compile_context>
chip_gen: v5e
topology: v5e:2x2
jax: 0.10.0
libtpu: 0.0.40
codegen_flags: <defaults>
</compile_context>

<pallas_src>
import jax
import jax.numpy as jnp
from jax.experimental import pallas as pl
from jax.experimental.pallas import tpu as pltpu


# ----------------------------------------------------------------------------
# Kernel
# ----------------------------------------------------------------------------
def coeffnet_kernel(x_ref, p_ref, o_ref):
    # x_ref block: (b_blk*128, 128) — b_blk batch elements folded into M.
    rows = x_ref.shape[0]
    bb = rows // 128
    x = x_ref[...]

    # Packed params (all slices are (8,128)-tile aligned):
    w1 = p_ref[0:128, :]       # (128,128): cols 0:64 = W1^T, cols 64:128 = 0
    w2 = p_ref[128:256, :]     # (128,128): rows 0:64 = W2^T, rows 64:128 = 0
    b1 = p_ref[256:257, :]     # (1,128):   cols 0:64 = b1,   cols 64:128 = 0
    b2 = p_ref[264:265, :]     # (1,128)

    # fc1 + ReLU.  Zero weight/bias padding keeps cols 64:128 exactly 0, so the
    # padded 128x128 matmul is bit-identical to the 128x64 one on real lanes.
    h = jnp.dot(x, w1, preferred_element_type=jnp.float32) + b1
    h = jnp.maximum(h, 0.0)

    # fc2.  Zero rows 64:128 of w2 make the padded h-columns contribute nothing.
    y = jnp.dot(h, w2, preferred_element_type=jnp.float32) + b2

    # Softmax over dim=1 of the (B, 128, 128) view == axis 1 per batch element.
    # Leading-dim split (rows -> bb x 128) is layout-free; the reduction runs
    # in the cheap sublane direction.
    y3 = y.reshape(bb, 128, 128)
    m = jnp.max(y3, axis=1, keepdims=True)        # (bb, 1, 128)
    e = jnp.exp(y3 - m)                           # (bb, 128, 128)
    s = jnp.sum(e, axis=1, keepdims=True)         # (bb, 1, 128)
    # Exact reciprocal keeps the strict 1e-5 check; it only touches (bb,1,128)
    # elements so approx=True would be noise anyway.
    out = e * pl.reciprocal(s, approx=False)
    o_ref[...] = out.reshape(rows, 128)


# ----------------------------------------------------------------------------
# Host-side helpers
# ----------------------------------------------------------------------------
def pack_params(w1, b1, w2, b2):
    """Pack fc1/fc2 weights+biases into one lane-aligned (272, 128) f32 block.

    w1: (128, 64) = W1^T, b1: (64,), w2: (64, 128) = W2^T, b2: (128,).
    """
    p = jnp.zeros((272, 128), jnp.float32)
    p = p.at[0:128, 0:64].set(w1)       # W1^T padded to (128,128)
    p = p.at[128:192, :].set(w2)        # W2^T padded to (128,128) (rows 192:256 = 0)
    p = p.at[256, 0:64].set(b1)         # b1 padded to a (1,128) 8-aligned row
    p = p.at[264, :].set(b2)            # b2 on an 8-aligned row
    return p


def coeffnet_forward(x, w1, b1, w2, b2, *, b_blk=8):
    """x: (B, C, H, W) float32 with C*H*W == 128*128 (here (B, 128, 16, 8)).

    b_blk batch elements (b_blk*128 M-rows) are processed per grid step with a
    constant per-step VMEM footprint; the 1-D grid is marked "parallel" so v7x
    megacore shards steps across its two TensorCores.
    """
    B = x.shape[0]
    xv = x.reshape(B, 128, -1)                    # torch .view(B, 128, -1)
    assert xv.shape[-1] == 128, "fc1 (Linear(128,64)) requires last dim == 128"

    b_blk = max(1, min(b_blk, B))
    num_blocks = pl.cdiv(B, b_blk)
    B_pad = num_blocks * b_blk
    if B_pad != B:
        xv = jnp.pad(xv, ((0, B_pad - B), (0, 0), (0, 0)))

    # 2-D lane-dense layout for the DMA engine: (B_pad*128, 128).
    x2 = xv.reshape(B_pad * 128, 128)
    params = pack_params(w1, b1, w2, b2)

    rows_blk = b_blk * 128
    cost = pl.CostEstimate(
        # two padded (B*128,128)x(128,128) matmuls
        flops=2 * 2 * B_pad * 128 * 128 * 128,
        transcendentals=B_pad * 128 * 128,        # exp in the softmax
        bytes_accessed=2 * B_pad * 128 * 128 * 4 + params.size * 4,
    )

    out2 = pl.pallas_call(
        coeffnet_kernel,
        out_shape=jax.ShapeDtypeStruct((B_pad * 128, 128), jnp.float32),
        grid_spec=pltpu.PrefetchScalarGridSpec(
            num_scalar_prefetch=0,
            grid=(num_blocks,),
            in_specs=[
                pl.BlockSpec((rows_blk, 128), lambda i: (i, 0)),   # x chunk
                pl.BlockSpec((272, 128), lambda i: (0, 0)),        # packed params
            ],
            out_specs=pl.BlockSpec((rows_blk, 128), lambda i: (i, 0)),
        ),
        compiler_params=pltpu.CompilerParams(
            dimension_semantics=("parallel",),
        ),
        cost_estimate=cost,
    )(x2, params)

    out = out2.reshape(B_pad, 128, 128)[:B]

    # TODO(synk): the original `x.view(B, 128, 1, 1)` is inconsistent with the
    # (B, 128, 128) tensor produced by fc2/softmax (would raise in PyTorch for
    # any input that satisfies fc1), so the result is returned as (B, 128, 128).
    return out


def init_params(key):
    """Deterministic init matching nn.Linear's default U(-1/sqrt(fan_in), ...)."""
    k1, k2, k3, k4 = jax.random.split(key, 4)
    lim1 = 1.0 / jnp.sqrt(128.0)
    lim2 = 1.0 / jnp.sqrt(64.0)
    # Stored pre-transposed: (in_features, out_features) for y = x @ W + b.
    w1 = jax.random.uniform(k1, (128, 64), jnp.float32, -lim1, lim1)
    b1 = jax.random.uniform(k2, (64,), jnp.float32, -lim1, lim1)
    w2 = jax.random.uniform(k3, (64, 128), jnp.float32, -lim2, lim2)
    b2 = jax.random.uniform(k4, (128,), jnp.float32, -lim2, lim2)
    return w1, b1, w2, b2


def coeffnet_reference(x, w1, b1, w2, b2):
    B = x.shape[0]
    xv = x.reshape(B, 128, -1)
    h = jnp.maximum(xv @ w1 + b1, 0.0)
    y = h @ w2 + b2
    return jax.nn.softmax(y, axis=1)


if __name__ == "__main__":
    key = jax.random.PRNGKey(0)
    kx, kp, kx2 = jax.random.split(key, 3)

    w1, b1, w2, b2 = init_params(kp)

    # NCHW input; C*H*W = 128*16*8 = 16384 = 128*128 so view(B,128,-1) -> (B,128,128)
    x = jax.random.normal(kx, (2, 128, 16, 8), dtype=jnp.float32)
    out = jax.block_until_ready(coeffnet_forward(x, w1, b1, w2, b2))
    ref = coeffnet_reference(x, w1, b1, w2, b2)
    assert out.shape == (2, 128, 128)
    assert jnp.allclose(out, ref, atol=1e-5, rtol=1e-5)

    # Exercise the multi-step grid + batch-padding path (B not divisible by b_blk).
    x2 = jax.random.normal(kx2, (10, 128, 16, 8), dtype=jnp.float32)
    out2 = jax.block_until_ready(coeffnet_forward(x2, w1, b1, w2, b2, b_blk=4))
    ref2 = coeffnet_reference(x2, w1, b1, w2, b2)
    assert out2.shape == (10, 128, 128)
    assert jnp.allclose(out2, ref2, atol=1e-5, rtol=1e-5)

    print("KERNEL_OK")
</pallas_src>

<mosaic_0001>
module attributes {stable_mosaic.version = 11 : i64} {
  func.func @coeffnet_kernel(%arg0: i32, %arg1: memref<256x128xf32, #tpu.memory_space<vmem>>, %arg2: memref<272x128xf32, #tpu.memory_space<vmem>>, %arg3: memref<256x128xf32, #tpu.memory_space<vmem>>) attributes {dimension_semantics = [#tpu.dimension_semantics<parallel>], iteration_bounds = array<i64: 1>, scalar_prefetch = 0 : i64, scratch_operands = 0 : i64, tpu.core_type = #tpu.core_type<tc>, window_params = [{transform_indices = @transform_0, window_bounds = array<i64: 256, 128>}, {pipeline_mode = #tpu.pipeline_mode<synchronous>, transform_indices = @transform_1, window_bounds = array<i64: 272, 128>}, {transform_indices = @transform_2, window_bounds = array<i64: 256, 128>}]} {
    %c0 = arith.constant 0 : index
    %c0_0 = arith.constant 0 : index
    %0 = vector.load %arg1[%c0, %c0_0] : memref<256x128xf32, #tpu.memory_space<vmem>>, vector<256x128xf32>
    %c0_1 = arith.constant 0 : index
    %c0_2 = arith.constant 0 : index
    %1 = vector.load %arg2[%c0_1, %c0_2] : memref<272x128xf32, #tpu.memory_space<vmem>>, vector<128x128xf32>
    %c128 = arith.constant 128 : index
    %c0_3 = arith.constant 0 : index
    %2 = vector.load %arg2[%c128, %c0_3] : memref<272x128xf32, #tpu.memory_space<vmem>>, vector<128x128xf32>
    %c256 = arith.constant 256 : index
    %c0_4 = arith.constant 0 : index
    %3 = vector.load %arg2[%c256, %c0_4] : memref<272x128xf32, #tpu.memory_space<vmem>>, vector<1x128xf32>
    %c264 = arith.constant 264 : index
    %c0_5 = arith.constant 0 : index
    %4 = vector.load %arg2[%c264, %c0_5] : memref<272x128xf32, #tpu.memory_space<vmem>>, vector<1x128xf32>
    %cst = arith.constant dense<0.000000e+00> : vector<256x128xf32>
    %5 = tpu.matmul %0, %1, %cst {dimension_numbers = #tpu.dot_dimension_numbers<[1], [0], [0], [1], [0, 0, 1, 1], [], []>} : vector<256x128xf32>, vector<128x128xf32>, vector<256x128xf32> -> vector<256x128xf32>
    %6 = vector.broadcast %3 : vector<1x128xf32> to vector<256x128xf32>
    %7 = arith.addf %5, %6 : vector<256x128xf32>
    %cst_6 = arith.constant 0.000000e+00 : f32
    %8 = vector.broadcast %cst_6 : f32 to vector<256x128xf32>
    %9 = arith.maximumf %7, %8 : vector<256x128xf32>
    %cst_7 = arith.constant dense<0.000000e+00> : vector<256x128xf32>
    %10 = tpu.matmul %9, %2, %cst_7 {dimension_numbers = #tpu.dot_dimension_numbers<[1], [0], [0], [1], [0, 0, 1, 1], [], []>} : vector<256x128xf32>, vector<128x128xf32>, vector<256x128xf32> -> vector<256x128xf32>
    %11 = vector.broadcast %4 : vector<1x128xf32> to vector<256x128xf32>
    %12 = arith.addf %10, %11 : vector<256x128xf32>
    %13 = vector.shape_cast %12 : vector<256x128xf32> to vector<2x128x128xf32>
    %cst_8 = arith.constant dense<0xFF800000> : vector<2x128xf32>
    %14 = vector.multi_reduction <maximumf>, %13, %cst_8 [1] : vector<2x128x128xf32> to vector<2x128xf32>
    %15 = vector.shape_cast %14 : vector<2x128xf32> to vector<2x1x128xf32>
    %16 = vector.broadcast %15 : vector<2x1x128xf32> to vector<2x128x128xf32>
    %17 = arith.subf %13, %16 : vector<2x128x128xf32>
    %18 = math.exp %17 : vector<2x128x128xf32>
    %cst_9 = arith.constant dense<0.000000e+00> : vector<2x128xf32>
    %19 = vector.multi_reduction <add>, %18, %cst_9 [1] : vector<2x128x128xf32> to vector<2x128xf32>
    %20 = vector.shape_cast %19 : vector<2x128xf32> to vector<2x1x128xf32>
    %21 = tpu.reciprocal %20 : vector<2x1x128xf32> -> vector<2x1x128xf32>
    %22 = vector.broadcast %21 : vector<2x1x128xf32> to vector<2x128x128xf32>
    %23 = arith.mulf %18, %22 : vector<2x128x128xf32>
    %24 = vector.shape_cast %23 : vector<2x128x128xf32> to vector<256x128xf32>
    %c0_10 = arith.constant 0 : index
    %c0_11 = arith.constant 0 : index
    %25 = vector.load %arg3[%c0_10, %c0_11] : memref<256x128xf32, #tpu.memory_space<vmem>>, vector<256x128xf32>
    tpu.vector_store %arg3[%c0_10, %c0_11], %24 {strides = array<i32>} : memref<256x128xf32, #tpu.memory_space<vmem>>, vector<256x128xf32>,
    return
  }
  func.func @transform_0(%arg0: i32) -> (i32, i32) {
    %c0_i32 = arith.constant 0 : i32
    %c0_i32_0 = arith.constant 0 : i32
    return %arg0, %c0_i32 : i32, i32
  }
  func.func @transform_1(%arg0: i32) -> (i32, i32) {
    %c0_i32 = arith.constant 0 : i32
    %c0_i32_0 = arith.constant 0 : i32
    %c0_i32_1 = arith.constant 0 : i32
    return %c0_i32, %c0_i32_0 : i32, i32
  }
  func.func @transform_2(%arg0: i32) -> (i32, i32) {
    %c0_i32 = arith.constant 0 : i32
    %c0_i32_0 = arith.constant 0 : i32
    return %arg0, %c0_i32 : i32, i32
  }
}

</mosaic_0001>

<llo_original>
// kernel: tpu_custom_call.1
$region0: #{tpu_custom_call.1}
  #allocation0 [shape = 'u32[]', space=smem, size = 0x4, offset = 0x4, fixed_abs, tag = 'smem constant byte address 0x4 - core index']
  #allocation1 [shape = 'u32[72,128]{1,0:T(1,128)}', space=vmem, size = 0x9000, scoped, tag = 'internal scratch']
  %s0 = inlined_call_operand.hbm [shape: f32[256,128], index: 0, kind: input, shape index: {}]
  %s1 = inlined_call_operand.hbm [shape: f32[272,128], index: 1, kind: input, shape index: {}]
  %s2 = inlined_call_operand.hbm [shape: f32[256,128], index: 2, kind: output, shape index: {}]
  %s3 = sld [smem:[#allocation0]]
  $region26: #{tpu_custom_call.1} parent=0
    _
  %s5 = ssub.s32 1, %s3
  %s6 = scalar_select 0, %s5, %s3
  $region1: #{tpu_custom_call.1} parent=0
    #allocation2 [shape = 'u8[131072]{0}', space=vmem, size = 0x20000, scoped, tag = 'input window, operand 0, single buffered']
    #allocation3 [shape = 's32[1]{0}', space=sflag, size = 0x4, scoped, tag = 'scoped memory for tpu_custom_call.1']
    #allocation4 [shape = 's32[1]{0}', space=sflag, size = 0x4, scoped, tag = 'scoped memory for tpu_custom_call.1']
    #allocation5 [shape = 'u8[139264]{0}', space=vmem, size = 0x22000, scoped, tag = 'input window, operand 1, single buffered']
    #allocation6 [shape = 's32[1]{0}', space=sflag, size = 0x4, scoped, tag = 'scoped memory for tpu_custom_call.1']
    #allocation7 [shape = 'u8[131072]{0}', space=vmem, size = 0x20000, scoped, tag = 'output window, operand 0, single buffered']
    %7 = vsyncpa [#allocation3], 0
    %8 = vsyncpa [#allocation6], 0
    %9 = vsyncpa [#allocation4], 0
    // Predicated region
    $region2: #{tpu_custom_call.1} parent=1 // pred_check
      _
    $region3: #{tpu_custom_call.1} parent=1 // pred_check_branch
      %11 = sbr.rel (0) target = $region5
    $region4: #{tpu_custom_call.1} parent=1 // pred_region
      %13 = vsyncadd [#allocation3], 0
      %s14 = sshll.u32 %s0, 4
      %s15 = int_to_ptr.hbm [resolvable:$true] %s14
      %s16 = sshll.u32 [#allocation2], 4
      %s17 = int_to_ptr.vmem [resolvable:$true] %s16
      %22 = dma.hbm_to_vmem [thread:$0]  %s15, 4096, %s17, [#allocation3], 128, 128, 8
    $region5: #{tpu_custom_call.1} parent=1 // pred_fallthru
      _
    // Predicated region
    $region6: #{tpu_custom_call.1} parent=1 // pred_check
      _
    $region7: #{tpu_custom_call.1} parent=1 // pred_check_branch
      %24 = sbr.rel (0) target = $region9
    $region8: #{tpu_custom_call.1} parent=1 // pred_region
      %26 = vsyncadd [#allocation6], 0
      %s27 = sshll.u32 %s1, 4
      %s28 = int_to_ptr.hbm [resolvable:$true] %s27
      %s29 = sshll.u32 [#allocation5], 4
      %s30 = int_to_ptr.vmem [resolvable:$true] %s29
      %35 = dma.hbm_to_vmem [thread:$0]  %s28, 4352, %s30, [#allocation6], 128, 128, 8
    $region9: #{tpu_custom_call.1} parent=1 // pred_fallthru
      _
    // Predicated region
    $region10: #{tpu_custom_call.1} parent=1 // pred_check
      _
    $region11: #{tpu_custom_call.1} parent=1 // pred_check_branch
      %37 = sbr.rel (0) target = $region13
    $region12: #{tpu_custom_call.1} parent=1 // pred_region
      %39 = dma.done [#allocation3], 4096
    $region13: #{tpu_custom_call.1} parent=1 // pred_fallthru
      _
    // Predicated region
    $region14: #{tpu_custom_call.1} parent=1 // pred_check
      _
    $region15: #{tpu_custom_call.1} parent=1 // pred_check_branch
      %41 = sbr.rel (0) target = $region17
    $region16: #{tpu_custom_call.1} parent=1 // pred_region
      %43 = dma.done [#allocation6], 4352
    $region17: #{tpu_custom_call.1} parent=1 // pred_fallthru
      _
    %v44 = vld [vmem:[#allocation2] sm:$0xff]
    %v45 = vld [vmem:[#allocation2 + $0x8] sm:$0xff]
    %v46 = vld [vmem:[#allocation2 + $0x10] sm:$0xff]
    %v47 = vld [vmem:[#allocation2 + $0x18] sm:$0xff]
    %v48 = vld [vmem:[#allocation2 + $0x20] sm:$0xff]
    %v49 = vld [vmem:[#allocation2 + $0x28] sm:$0xff]
    %v50 = vld [vmem:[#allocation2 + $0x30] sm:$0xff]
    %v51 = vld [vmem:[#allocation2 + $0x38] sm:$0xff]
    %v52 = vld [vmem:[#allocation2 + $0x40] sm:$0xff]
    %v53 = vld [vmem:[#allocation2 + $0x48] sm:$0xff]
    %v54 = vld [vmem:[#allocation2 + $0x50] sm:$0xff]
    %v55 = vld [vmem:[#allocation2 + $0x58] sm:$0xff]
    %v56 = vld [vmem:[#allocation2 + $0x60] sm:$0xff]
    %v57 = vld [vmem:[#allocation2 + $0x68] sm:$0xff]
    %v58 = vld [vmem:[#allocation2 + $0x70] sm:$0xff]
    %v59 = vld [vmem:[#allocation2 + $0x78] sm:$0xff]
    %v60 = vld [vmem:[#allocation2 + $0x80] sm:$0xff]
    %v61 = vld [vmem:[#allocation2 + $0x88] sm:$0xff]
    %v62 = vld [vmem:[#allocation2 + $0x90] sm:$0xff]
    %v63 = vld [vmem:[#allocation2 + $0x98] sm:$0xff]
    %v64 = vld [vmem:[#allocation2 + $0xa0] sm:$0xff]
    %v65 = vld [vmem:[#allocation2 + $0xa8] sm:$0xff]
    %v66 = vld [vmem:[#allocation2 + $0xb0] sm:$0xff]
    %v67 = vld [vmem:[#allocation2 + $0xb8] sm:$0xff]
    %v68 = vld [vmem:[#allocation2 + $0xc0] sm:$0xff]
    %v69 = vld [vmem:[#allocation2 + $0xc8] sm:$0xff]
    %v70 = vld [vmem:[#allocation2 + $0xd0] sm:$0xff]
    %v71 = vld [vmem:[#allocation2 + $0xd8] sm:$0xff]
    %v72 = vld [vmem:[#allocation2 + $0xe0] sm:$0xff]
    %v73 = vld [vmem:[#allocation2 + $0xe8] sm:$0xff]
    %v74 = vld [vmem:[#allocation2 + $0xf0] sm:$0xff]
    %v75 = vld [vmem:[#allocation2 + $0xf8] sm:$0xff]
    %v76 = vld [vmem:[#allocation5] sm:$0xff]
    %v77 = vld [vmem:[#allocation5 + $0x8] sm:$0xff]
    %v78 = vld [vmem:[#allocation5 + $0x10] sm:$0xff]
    %v79 = vld [vmem:[#allocation5 + $0x18] sm:$0xff]
    %v80 = vld [vmem:[#allocation5 + $0x20] sm:$0xff]
    %v81 = vld [vmem:[#allocation5 + $0x28] sm:$0xff]
    %v82 = vld [vmem:[#allocation5 + $0x30] sm:$0xff]
    %v83 = vld [vmem:[#allocation5 + $0x38] sm:$0xff]
    %v84 = vld [vmem:[#allocation5 + $0x40] sm:$0xff]
    %v85 = vld [vmem:[#allocation5 + $0x48] sm:$0xff]
    %v86 = vld [vmem:[#allocation5 + $0x50] sm:$0xff]
    %v87 = vld [vmem:[#allocation5 + $0x58] sm:$0xff]
    %v88 = vld [vmem:[#allocation5 + $0x60] sm:$0xff]
    %v89 = vld [vmem:[#allocation5 + $0x68] sm:$0xff]
    %v90 = vld [vmem:[#allocation5 + $0x70] sm:$0xff]
    %v91 = vld [vmem:[#allocation5 + $0x78] sm:$0xff]
    %v92 = vld [vmem:[#allocation5 + $0x80] sm:$0xff]
    %v93 = vld [vmem:[#allocation5 + $0x88] sm:$0xff]
    %v94 = vld [vmem:[#allocation5 + $0x90] sm:$0xff]
    %v95 = vld [vmem:[#allocation5 + $0x98] sm:$0xff]
    %v96 = vld [vmem:[#allocation5 + $0xa0] sm:$0xff]
    %v97 = vld [vmem:[#allocation5 + $0xa8] sm:$0xff]
    %v98 = vld [vmem:[#allocation5 + $0xb0] sm:$0xff]
    %v99 = vld [vmem:[#allocation5 + $0xb8] sm:$0xff]
    %v100 = vld [vmem:[#allocation5 + $0xc0] sm:$0xff]
    %v101 = vld [vmem:[#allocation5 + $0xc8] sm:$0xff]
    %v102 = vld [vmem:[#allocation5 + $0xd0] sm:$0xff]
    %v103 = vld [vmem:[#allocation5 + $0xd8] sm:$0xff]
    %v104 = vld [vmem:[#allocation5 + $0xe0] sm:$0xff]
    %v105 = vld [vmem:[#allocation5 + $0xe8] sm:$0xff]
    %v106 = vld [vmem:[#allocation5 + $0xf0] sm:$0xff]
    %v107 = vld [vmem:[#allocation5 + $0xf8] sm:$0xff]
    %v108 = vld [vmem:[#allocation5 + $0x100] sm:$0x1]
    %v109 = vld [vmem:[#allocation5 + $0x108] sm:$0x1]
    %v110 = vperm.slane %v108, 0
    %111 = vmatpush.msra.mxu0 %v91
    %112 = vmatpush.msra.mxu0 %v90
    %113 = vmatpush.msra.mxu0 %v89
    %114 = vmatpush.msra.mxu0 %v88
    %115 = vmatpush.msra.mxu0 %v87
    %116 = vmatpush.msra.mxu0 %v86
    %117 = vmatpush.msra.mxu0 %v85
    %118 = vmatpush.msra.mxu0 %v84
    %119 = vmatpush.msra.mxu0 %v83
    %120 = vmatpush.msra.mxu0 %v82
    %121 = vmatpush.msra.mxu0 %v81
    %122 = vmatpush.msra.mxu0 %v80
    %123 = vmatpush.msra.mxu0 %v79
    %124 = vmatpush.msra.mxu0 %v78
    %125 = vmatpush.msra.mxu0 %v77
    %126 = vmatpush.msra.mxu0 %v76
    %127 = vmatmul.f32.gmra.mxu0 %v44
    %v128 = vpop.f32.mrf.mxu0
    %v129 = vadd.f32 %v110, %v128
    %130 = vmatmul.f32.gmra.mxu0 %v45
    %v131 = vpop.f32.mrf.mxu0
    %v132 = vadd.f32 %v110, %v131
    %133 = vmatmul.f32.gmra.mxu0 %v46
    %v134 = vpop.f32.mrf.mxu0
    %v135 = vadd.f32 %v110, %v134
    %136 = vmatmul.f32.gmra.mxu0 %v47
    %v137 = vpop.f32.mrf.mxu0
    %v138 = vadd.f32 %v110, %v137
    %139 = vmatmul.f32.gmra.mxu0 %v48
    %v140 = vpop.f32.mrf.mxu0
    %v141 = vadd.f32 %v110, %v140
    %142 = vmatmul.f32.gmra.mxu0 %v49
    %v143 = vpop.f32.mrf.mxu0
    %v144 = vadd.f32 %v110, %v143
    %145 = vmatmul.f32.gmra.mxu0 %v50
    %v146 = vpop.f32.mrf.mxu0
    %v147 = vadd.f32 %v110, %v146
    %148 = vmatmul.f32.gmra.mxu0 %v51
    %v149 = vpop.f32.mrf.mxu0
    %v150 = vadd.f32 %v110, %v149
    %151 = vmatmul.f32.gmra.mxu0 %v52
    %v152 = vpop.f32.mrf.mxu0
    %v153 = vadd.f32 %v110, %v152
    %154 = vmatmul.f32.gmra.mxu0 %v53
    %v155 = vpop.f32.mrf.mxu0
    %v156 = vadd.f32 %v110, %v155
    %157 = vmatmul.f32.gmra.mxu0 %v54
    %v158 = vpop.f32.mrf.mxu0
    %v159 = vadd.f32 %v110, %v158
    %160 = vmatmul.f32.gmra.mxu0 %v55
    %v161 = vpop.f32.mrf.mxu0
    %v162 = vadd.f32 %v110, %v161
    %163 = vmatmul.f32.gmra.mxu0 %v56
    %v164 = vpop.f32.mrf.mxu0
    %v165 = vadd.f32 %v110, %v164
    %166 = vmatmul.f32.gmra.mxu0 %v57
    %v167 = vpop.f32.mrf.mxu0
    %v168 = vadd.f32 %v110, %v167
    %169 = vmatmul.f32.gmra.mxu0 %v58
    %v170 = vpop.f32.mrf.mxu0
    %v171 = vadd.f32 %v110, %v170
    %172 = vmatmul.f32.gmra.mxu0 %v59
    %v173 = vpop.f32.mrf.mxu0
    %v174 = vadd.f32 %v110, %v173
    %175 = vmatmul.f32.gmra.mxu0 %v60
    %v176 = vpop.f32.mrf.mxu0
    %v177 = vadd.f32 %v110, %v176
    %178 = vmatmul.f32.gmra.mxu0 %v61
    %v179 = vpop.f32.mrf.mxu0
    %v180 = vadd.f32 %v110, %v179
    %181 = vmatmul.f32.gmra.mxu0 %v62
    %v182 = vpop.f32.mrf.mxu0
    %v183 = vadd.f32 %v110, %v182
    %184 = vmatmul.f32.gmra.mxu0 %v63
    %v185 = vpop.f32.mrf.mxu0
    %v186 = vadd.f32 %v110, %v185
    %187 = vmatmul.f32.gmra.mxu0 %v64
    %v188 = vpop.f32.mrf.mxu0
    %v189 = vadd.f32 %v110, %v188
    %190 = vmatmul.f32.gmra.mxu0 %v65
    %v191 = vpop.f32.mrf.mxu0
    %v192 = vadd.f32 %v110, %v191
    %193 = vmatmul.f32.gmra.mxu0 %v66
    %v194 = vpop.f32.mrf.mxu0
    %v195 = vadd.f32 %v110, %v194
    %196 = vmatmul.f32.gmra.mxu0 %v67
    %v197 = vpop.f32.mrf.mxu0
    %v198 = vadd.f32 %v110, %v197
    %199 = vmatmul.f32.gmra.mxu0 %v68
    %v200 = vpop.f32.mrf.mxu0
    %v201 = vadd.f32 %v110, %v200
    %202 = vmatmul.f32.gmra.mxu0 %v69
    %v203 = vpop.f32.mrf.mxu0
    %v204 = vadd.f32 %v110, %v203
    %205 = vmatmul.f32.gmra.mxu0 %v70
    %v206 = vpop.f32.mrf.mxu0
    %v207 = vadd.f32 %v110, %v206
    %208 = vmatmul.f32.gmra.mxu0 %v71
    %v209 = vpop.f32.mrf.mxu0
    %v210 = vadd.f32 %v110, %v209
    %211 = vmatmul.f32.gmra.mxu0 %v72
    %v212 = vpop.f32.mrf.mxu0
    %v213 = vadd.f32 %v110, %v212
    %214 = vmatmul.f32.gmra.mxu0 %v73
    %v215 = vpop.f32.mrf.mxu0
    %v216 = vadd.f32 %v110, %v215
    %217 = vmatmul.f32.gmra.mxu0 %v74
    %v218 = vpop.f32.mrf.mxu0
    %v219 = vadd.f32 %v110, %v218
    %220 = vmatmul.f32.gmra.mxu0 %v75
    %v221 = vpop.f32.mrf.mxu0
    %v222 = vadd.f32 %v110, %v221
    %223 = vdwg.mxu0
    %v224 = vmax.f32 %v129, 0.0
    %v225 = vmax.f32 %v132, 0.0
    %v226 = vmax.f32 %v135, 0.0
    %v227 = vmax.f32 %v138, 0.0
    %v228 = vmax.f32 %v141, 0.0
    %v229 = vmax.f32 %v144, 0.0
    %v230 = vmax.f32 %v147, 0.0
    %v231 = vmax.f32 %v150, 0.0
    %v232 = vmax.f32 %v153, 0.0
    %v233 = vmax.f32 %v156, 0.0
    %v234 = vmax.f32 %v159, 0.0
    %v235 = vmax.f32 %v162, 0.0
    %v236 = vmax.f32 %v165, 0.0
    %v237 = vmax.f32 %v168, 0.0
    %v238 = vmax.f32 %v171, 0.0
    %v239 = vmax.f32 %v174, 0.0
    %v240 = vmax.f32 %v177, 0.0
    %v241 = vmax.f32 %v180, 0.0
    %v242 = vmax.f32 %v183, 0.0
    %v243 = vmax.f32 %v186, 0.0
    %v244 = vmax.f32 %v189, 0.0
    %v245 = vmax.f32 %v192, 0.0
    %v246 = vmax.f32 %v195, 0.0
    %v247 = vmax.f32 %v198, 0.0
    %v248 = vmax.f32 %v201, 0.0
    %v249 = vmax.f32 %v204, 0.0
    %v250 = vmax.f32 %v207, 0.0
    %v251 = vmax.f32 %v210, 0.0
    %v252 = vmax.f32 %v213, 0.0
    %v253 = vmax.f32 %v216, 0.0
    %v254 = vmax.f32 %v219, 0.0
    %v255 = vmax.f32 %v222, 0.0
    %v256 = vperm.slane %v109, 0
    %257 = vmatpush.msra.mxu0 %v107
    %258 = vmatpush.msra.mxu0 %v106
    %259 = vmatpush.msra.mxu0 %v105
    %260 = vmatpush.msra.mxu0 %v104
    %261 = vmatpush.msra.mxu0 %v103
    %262 = vmatpush.msra.mxu0 %v102
    %263 = vmatpush.msra.mxu0 %v101
    %264 = vmatpush.msra.mxu0 %v100
    %265 = vmatpush.msra.mxu0 %v99
    %266 = vmatpush.msra.mxu0 %v98
    %267 = vmatpush.msra.mxu0 %v97
    %268 = vmatpush.msra.mxu0 %v96
    %269 = vmatpush.msra.mxu0 %v95
    %270 = vmatpush.msra.mxu0 %v94
    %271 = vmatpush.msra.mxu0 %v93
    %272 = vmatpush.msra.mxu0 %v92
    %273 = vmatmul.f32.gmra.mxu0 %v224
    %v274 = vpop.f32.mrf.mxu0
    %v275 = vadd.f32 %v256, %v274
    %276 = vmatmul.f32.gmra.mxu0 %v225
    %v277 = vpop.f32.mrf.mxu0
    %v278 = vadd.f32 %v256, %v277
    %279 = vmatmul.f32.gmra.mxu0 %v226
    %v280 = vpop.f32.mrf.mxu0
    %v281 = vadd.f32 %v256, %v280
    %282 = vmatmul.f32.gmra.mxu0 %v227
    %v283 = vpop.f32.mrf.mxu0
    %v284 = vadd.f32 %v256, %v283
    %285 = vmatmul.f32.gmra.mxu0 %v228
    %v286 = vpop.f32.mrf.mxu0
    %v287 = vadd.f32 %v256, %v286
    %288 = vmatmul.f32.gmra.mxu0 %v229
    %v289 = vpop.f32.mrf.mxu0
    %v290 = vadd.f32 %v256, %v289
    %291 = vmatmul.f32.gmra.mxu0 %v230
    %v292 = vpop.f32.mrf.mxu0
    %v293 = vadd.f32 %v256, %v292
    %294 = vmatmul.f32.gmra.mxu0 %v231
    %v295 = vpop.f32.mrf.mxu0
    %v296 = vadd.f32 %v256, %v295
    %297 = vmatmul.f32.gmra.mxu0 %v232
    %v298 = vpop.f32.mrf.mxu0
    %v299 = vadd.f32 %v256, %v298
    %300 = vmatmul.f32.gmra.mxu0 %v233
    %v301 = vpop.f32.mrf.mxu0
    %v302 = vadd.f32 %v256, %v301
    %303 = vmatmul.f32.gmra.mxu0 %v234
    %v304 = vpop.f32.mrf.mxu0
    %v305 = vadd.f32 %v256, %v304
    %306 = vmatmul.f32.gmra.mxu0 %v235
    %v307 = vpop.f32.mrf.mxu0
    %v308 = vadd.f32 %v256, %v307
    %309 = vmatmul.f32.gmra.mxu0 %v236
    %v310 = vpop.f32.mrf.mxu0
    %v311 = vadd.f32 %v256, %v310
    %312 = vmatmul.f32.gmra.mxu0 %v237
    %v313 = vpop.f32.mrf.mxu0
    %v314 = vadd.f32 %v256, %v313
    %315 = vmatmul.f32.gmra.mxu0 %v238
    %v316 = vpop.f32.mrf.mxu0
    %v317 = vadd.f32 %v256, %v316
    %318 = vmatmul.f32.gmra.mxu0 %v239
    %v319 = vpop.f32.mrf.mxu0
    %v320 = vadd.f32 %v256, %v319
    %321 = vmatmul.f32.gmra.mxu0 %v240
    %v322 = vpop.f32.mrf.mxu0
    %v323 = vadd.f32 %v256, %v322
    %324 = vmatmul.f32.gmra.mxu0 %v241
    %v325 = vpop.f32.mrf.mxu0
    %v326 = vadd.f32 %v256, %v325
    %327 = vmatmul.f32.gmra.mxu0 %v242
    %v328 = vpop.f32.mrf.mxu0
    %v329 = vadd.f32 %v256, %v328
    %330 = vmatmul.f32.gmra.mxu0 %v243
    %v331 = vpop.f32.mrf.mxu0
    %v332 = vadd.f32 %v256, %v331
    %333 = vmatmul.f32.gmra.mxu0 %v244
    %v334 = vpop.f32.mrf.mxu0
    %v335 = vadd.f32 %v256, %v334
    %336 = vmatmul.f32.gmra.mxu0 %v245
    %v337 = vpop.f32.mrf.mxu0
    %v338 = vadd.f32 %v256, %v337
    %339 = vmatmul.f32.gmra.mxu0 %v246
    %v340 = vpop.f32.mrf.mxu0
    %v341 = vadd.f32 %v256, %v340
    %342 = vmatmul.f32.gmra.mxu0 %v247
    %v343 = vpop.f32.mrf.mxu0
    %v344 = vadd.f32 %v256, %v343
    %345 = vmatmul.f32.gmra.mxu0 %v248
    %v346 = vpop.f32.mrf.mxu0
    %v347 = vadd.f32 %v256, %v346
    %348 = vmatmul.f32.gmra.mxu0 %v249
    %v349 = vpop.f32.mrf.mxu0
    %v350 = vadd.f32 %v256, %v349
    %351 = vmatmul.f32.gmra.mxu0 %v250
    %v352 = vpop.f32.mrf.mxu0
    %v353 = vadd.f32 %v256, %v352
    %354 = vmatmul.f32.gmra.mxu0 %v251
    %v355 = vpop.f32.mrf.mxu0
    %v356 = vadd.f32 %v256, %v355
    %357 = vmatmul.f32.gmra.mxu0 %v252
    %v358 = vpop.f32.mrf.mxu0
    %v359 = vadd.f32 %v256, %v358
    %360 = vmatmul.f32.gmra.mxu0 %v253
    %v361 = vpop.f32.mrf.mxu0
    %v362 = vadd.f32 %v256, %v361
    %363 = vmatmul.f32.gmra.mxu0 %v254
    %v364 = vpop.f32.mrf.mxu0
    %v365 = vadd.f32 %v256, %v364
    %366 = vmatmul.f32.gmra.mxu0 %v255
    %v367 = vpop.f32.mrf.mxu0
    %v368 = vadd.f32 %v256, %v367
    %369 = vdwg.mxu0
    %v370 = vmax.f32 %v275, %v281
    %v371 = vmax.f32 %v278, %v284
    %v372 = vmax.f32 %v370, %v287
    %v373 = vmax.f32 %v371, %v290
    %v374 = vmax.f32 %v372, %v293
    %v375 = vmax.f32 %v373, %v296
    %v376 = vmax.f32 %v374, %v299
    %v377 = vmax.f32 %v375, %v302
    %v378 = vmax.f32 %v376, %v305
    %v379 = vmax.f32 %v377, %v308
    %v380 = vmax.f32 %v378, %v311
    %v381 = vmax.f32 %v379, %v314
    %v382 = vmax.f32 %v380, %v317
    %v383 = vmax.f32 %v381, %v320
    %v384 = vmax.f32 %v382, %v383
    %v385 = vrot.slane %v384, 4
    %v386 = vmax.f32 %v384, %v385
    %v387 = vrot.slane %v386, 2
    %v388 = vmax.f32 %v386, %v387
    %v389 = vrot.slane %v388, 1
    %v390 = vmax.f32 %v388, %v389
    %v391 = vmax.f32 %v323, %v329
    %v392 = vmax.f32 %v326, %v332
    %v393 = vmax.f32 %v391, %v335
    %v394 = vmax.f32 %v392, %v338
    %v395 = vmax.f32 %v393, %v341
    %v396 = vmax.f32 %v394, %v344
    %v397 = vmax.f32 %v395, %v347
    %v398 = vmax.f32 %v396, %v350
    %v399 = vmax.f32 %v397, %v353
    %v400 = vmax.f32 %v398, %v356
    %v401 = vmax.f32 %v399, %v359
    %v402 = vmax.f32 %v400, %v362
    %v403 = vmax.f32 %v401, %v365
    %v404 = vmax.f32 %v402, %v368
    %v405 = vmax.f32 %v403, %v404
    %v406 = vrot.slane %v405, 4
    %v407 = vmax.f32 %v405, %v406
    %v408 = vrot.slane %v407, 2
    %v409 = vmax.f32 %v407, %v408
    %v410 = vrot.slane %v409, 1
    %v411 = vmax.f32 %v409, %v410
    %v412 = vsub.f32 %v275, %v390
    %v413 = vsub.f32 %v278, %v390
    %v414 = vsub.f32 %v281, %v390
    %v415 = vsub.f32 %v284, %v390
    %v416 = vsub.f32 %v287, %v390
    %v417 = vsub.f32 %v290, %v390
    %v418 = vsub.f32 %v293, %v390
    %v419 = vsub.f32 %v296, %v390
    %v420 = vsub.f32 %v299, %v390
    %v421 = vsub.f32 %v302, %v390
    %v422 = vsub.f32 %v305, %v390
    %v423 = vsub.f32 %v308, %v390
    %v424 = vsub.f32 %v311, %v390
    %v425 = vsub.f32 %v314, %v390
    %v426 = vsub.f32 %v317, %v390
    %v427 = vsub.f32 %v320, %v390
    %v428 = vsub.f32 %v323, %v411
    %v429 = vsub.f32 %v326, %v411
    %v430 = vsub.f32 %v329, %v411
    %v431 = vsub.f32 %v332, %v411
    %v432 = vsub.f32 %v335, %v411
    %v433 = vsub.f32 %v338, %v411
    %v434 = vsub.f32 %v341, %v411
    %v435 = vsub.f32 %v344, %v411
    %v436 = vsub.f32 %v347, %v411
    %v437 = vsub.f32 %v350, %v411
    %v438 = vsub.f32 %v353, %v411
    %v439 = vsub.f32 %v356, %v411
    %v440 = vsub.f32 %v359, %v411
    %v441 = vsub.f32 %v362, %v411
    %v442 = vsub.f32 %v365, %v411
    %v443 = vsub.f32 %v368, %v411
    %v444 = vmul.f32 %v412, 1.442695
    %v445 = vpow.pop %v444
    %v446 = vmul.f32 %v413, 1.442695
    %v447 = vpow.pop %v446
    %v448 = vmul.f32 %v414, 1.442695
    %v449 = vpow.pop %v448
    %v450 = vmul.f32 %v415, 1.442695
    %v451 = vpow.pop %v450
    %v452 = vmul.f32 %v416, 1.442695
    %v453 = vpow.pop %v452
    %v454 = vmul.f32 %v417, 1.442695
    %v455 = vpow.pop %v454
    %v456 = vmul.f32 %v418, 1.442695
    %v457 = vpow.pop %v456
    %v458 = vmul.f32 %v419, 1.442695
    %v459 = vpow.pop %v458
    %v460 = vmul.f32 %v420, 1.442695
    %v461 = vpow.pop %v460
    %v462 = vmul.f32 %v421, 1.442695
    %v463 = vpow.pop %v462
    %v464 = vmul.f32 %v422, 1.442695
    %v465 = vpow.pop %v464
    %v466 = vmul.f32 %v423, 1.442695
    %v467 = vpow.pop %v466
    %v468 = vmul.f32 %v424, 1.442695
    %v469 = vpow.pop %v468
    %v470 = vmul.f32 %v425, 1.442695
    %v471 = vpow.pop %v470
    %v472 = vmul.f32 %v426, 1.442695
    %v473 = vpow.pop %v472
    %v474 = vmul.f32 %v427, 1.442695
    %v475 = vpow.pop %v474
    %v476 = vmul.f32 %v428, 1.442695
    %v477 = vpow.pop %v476
    %v478 = vmul.f32 %v429, 1.442695
    %v479 = vpow.pop %v478
    %v480 = vmul.f32 %v430, 1.442695
    %v481 = vpow.pop %v480
    %v482 = vmul.f32 %v431, 1.442695
    %v483 = vpow.pop %v482
    %v484 = vmul.f32 %v432, 1.442695
    %v485 = vpow.pop %v484
    %v486 = vmul.f32 %v433, 1.442695
    %v487 = vpow.pop %v486
    %v488 = vmul.f32 %v434, 1.442695
    %v489 = vpow.pop %v488
    %v490 = vmul.f32 %v435, 1.442695
    %v491 = vpow.pop %v490
    %v492 = vmul.f32 %v436, 1.442695
    %v493 = vpow.pop %v492
    %v494 = vmul.f32 %v437, 1.442695
    %v495 = vpow.pop %v494
    %v496 = vmul.f32 %v438, 1.442695
    %v497 = vpow.pop %v496
    %v498 = vmul.f32 %v439, 1.442695
    %v499 = vpow.pop %v498
    %v500 = vmul.f32 %v440, 1.442695
    %v501 = vpow.pop %v500
    %v502 = vmul.f32 %v441, 1.442695
    %v503 = vpow.pop %v502
    %v504 = vmul.f32 %v442, 1.442695
    %v505 = vpow.pop %v504
    %v506 = vmul.f32 %v443, 1.442695
    %v507 = vpow.pop %v506
    %v508 = vadd.f32 %v445, %v447
    %v509 = vadd.f32 %v508, %v449
    %v510 = vadd.f32 %v509, %v451
    %v511 = vadd.f32 %v510, %v453
    %v512 = vadd.f32 %v511, %v455
    %v513 = vadd.f32 %v512, %v457
    %v514 = vadd.f32 %v513, %v459
    %v515 = vadd.f32 %v514, %v461
    %v516 = vadd.f32 %v515, %v463
    %v517 = vadd.f32 %v516, %v465
    %v518 = vadd.f32 %v517, %v467
    %v519 = vadd.f32 %v518, %v469
    %v520 = vadd.f32 %v519, %v471
    %v521 = vadd.f32 %v520, %v473
    %v522 = vadd.f32 %v521, %v475
    %v523 = vrot.slane %v522, 4
    %v524 = vadd.f32 %v522, %v523
    %v525 = vrot.slane %v524, 2
    %v526 = vadd.f32 %v524, %v525
    %v527 = vrot.slane %v526, 1
    %v528 = vadd.f32 %v526, %v527
    %v529 = vadd.f32 %v477, %v479
    %v530 = vadd.f32 %v529, %v481
    %v531 = vadd.f32 %v530, %v483
    %v532 = vadd.f32 %v531, %v485
    %v533 = vadd.f32 %v532, %v487
    %v534 = vadd.f32 %v533, %v489
    %v535 = vadd.f32 %v534, %v491
    %v536 = vadd.f32 %v535, %v493
    %v537 = vadd.f32 %v536, %v495
    %v538 = vadd.f32 %v537, %v497
    %v539 = vadd.f32 %v538, %v499
    %v540 = vadd.f32 %v539, %v501
    %v541 = vadd.f32 %v540, %v503
    %v542 = vadd.f32 %v541, %v505
    %v543 = vadd.f32 %v542, %v507
    %v544 = vrot.slane %v543, 4
    %v545 = vadd.f32 %v543, %v544
    %v546 = vrot.slane %v545, 2
    %v547 = vadd.f32 %v545, %v546
    %v548 = vrot.slane %v547, 1
    %v549 = vadd.f32 %v547, %v548
    %v550 = vrcp.pop %v528
    %v551 = vmul.f32 %v528, %v550
    %v552 = vsub.f32 1.0, %v551
    %v553 = vmul.f32 %v550, %v552
    %v554 = vadd.f32 %v550, %v553
    %vm555 = vweird.f32 %v528
    %vm556 = vweird.f32 %v550
    %vm557 = vmor %vm555, %vm556
    %v558 = vsel %vm557, %v550, %v554
    %v559 = vand.u32 2147483647, %v528
    %vm560 = vcmp.eq.f32.partialorder %v559, 8.507059e+37
    %v561 = vand.u32 %v528, 2147483648
    %v562 = vor.u32 1.1754944e-38, %v561
    %v563 = vsel %vm560, %v562, %v558
    %v564 = vrcp.pop %v549
    %v565 = vmul.f32 %v549, %v564
    %v566 = vsub.f32 1.0, %v565
    %v567 = vmul.f32 %v564, %v566
    %v568 = vadd.f32 %v564, %v567
    %vm569 = vweird.f32 %v549
    %vm570 = vweird.f32 %v564
    %vm571 = vmor %vm569, %vm570
    %v572 = vsel %vm571, %v564, %v568
    %v573 = vand.u32 2147483647, %v549
    %vm574 = vcmp.eq.f32.partialorder %v573, 8.507059e+37
    %v575 = vand.u32 %v549, 2147483648
    %v576 = vor.u32 1.1754944e-38, %v575
    %v577 = vsel %vm574, %v576, %v572
    %v578 = vmul.f32 %v445, %v563
    %v579 = vmul.f32 %v447, %v563
    %v580 = vmul.f32 %v449, %v563
    %v581 = vmul.f32 %v451, %v563
    %v582 = vmul.f32 %v453, %v563
    %v583 = vmul.f32 %v455, %v563
    %v584 = vmul.f32 %v457, %v563
    %v585 = vmul.f32 %v459, %v563
    %v586 = vmul.f32 %v461, %v563
    %v587 = vmul.f32 %v463, %v563
    %v588 = vmul.f32 %v465, %v563
    %v589 = vmul.f32 %v467, %v563
    %v590 = vmul.f32 %v469, %v563
    %v591 = vmul.f32 %v471, %v563
    %v592 = vmul.f32 %v473, %v563
    %v593 = vmul.f32 %v475, %v563
    %v594 = vmul.f32 %v477, %v577
    %v595 = vmul.f32 %v479, %v577
    %v596 = vmul.f32 %v481, %v577
    %v597 = vmul.f32 %v483, %v577
    %v598 = vmul.f32 %v485, %v577
    %v599 = vmul.f32 %v487, %v577
    %v600 = vmul.f32 %v489, %v577
    %v601 = vmul.f32 %v491, %v577
    %v602 = vmul.f32 %v493, %v577
    %v603 = vmul.f32 %v495, %v577
    %v604 = vmul.f32 %v497, %v577
    %v605 = vmul.f32 %v499, %v577
    %v606 = vmul.f32 %v501, %v577
    %v607 = vmul.f32 %v503, %v577
    %v608 = vmul.f32 %v505, %v577
    %v609 = vmul.f32 %v507, %v577
    %610 = vst [vmem:[#allocation7] sm:$0xff] %v578
    %611 = vst [vmem:[#allocation7 + $0x8] sm:$0xff] %v579
    %612 = vst [vmem:[#allocation7 + $0x10] sm:$0xff] %v580
    %613 = vst [vmem:[#allocation7 + $0x18] sm:$0xff] %v581
    %614 = vst [vmem:[#allocation7 + $0x20] sm:$0xff] %v582
    %615 = vst [vmem:[#allocation7 + $0x28] sm:$0xff] %v583
    %616 = vst [vmem:[#allocation7 + $0x30] sm:$0xff] %v584
    %617 = vst [vmem:[#allocation7 + $0x38] sm:$0xff] %v585
    %618 = vst [vmem:[#allocation7 + $0x40] sm:$0xff] %v586
    %619 = vst [vmem:[#allocation7 + $0x48] sm:$0xff] %v587
    %620 = vst [vmem:[#allocation7 + $0x50] sm:$0xff] %v588
    %621 = vst [vmem:[#allocation7 + $0x58] sm:$0xff] %v589
    %622 = vst [vmem:[#allocation7 + $0x60] sm:$0xff] %v590
    %623 = vst [vmem:[#allocation7 + $0x68] sm:$0xff] %v591
    %624 = vst [vmem:[#allocation7 + $0x70] sm:$0xff] %v592
    %625 = vst [vmem:[#allocation7 + $0x78] sm:$0xff] %v593
    %626 = vst [vmem:[#allocation7 + $0x80] sm:$0xff] %v594
    %627 = vst [vmem:[#allocation7 + $0x88] sm:$0xff] %v595
    %628 = vst [vmem:[#allocation7 + $0x90] sm:$0xff] %v596
    %629 = vst [vmem:[#allocation7 + $0x98] sm:$0xff] %v597
    %630 = vst [vmem:[#allocation7 + $0xa0] sm:$0xff] %v598
    %631 = vst [vmem:[#allocation7 + $0xa8] sm:$0xff] %v599
    %632 = vst [vmem:[#allocation7 + $0xb0] sm:$0xff] %v600
    %633 = vst [vmem:[#allocation7 + $0xb8] sm:$0xff] %v601
    %634 = vst [vmem:[#allocation7 + $0xc0] sm:$0xff] %v602
    %635 = vst [vmem:[#allocation7 + $0xc8] sm:$0xff] %v603
    %636 = vst [vmem:[#allocation7 + $0xd0] sm:$0xff] %v604
    %637 = vst [vmem:[#allocation7 + $0xd8] sm:$0xff] %v605
    %638 = vst [vmem:[#allocation7 + $0xe0] sm:$0xff] %v606
    %639 = vst [vmem:[#allocation7 + $0xe8] sm:$0xff] %v607
    %640 = vst [vmem:[#allocation7 + $0xf0] sm:$0xff] %v608
    %641 = vst [vmem:[#allocation7 + $0xf8] sm:$0xff] %v609
    // Predicated region
    $region18: #{tpu_custom_call.1} parent=1 // pred_check
      _
    $region19: #{tpu_custom_call.1} parent=1 // pred_check_branch
      %643 = sbr.rel (0) target = $region21
    $region20: #{tpu_custom_call.1} parent=1 // pred_region
      %645 = vsyncadd [#allocation4], 0
      %s646 = sshll.u32 [#allocation7], 4
      %s647 = int_to_ptr.vmem [resolvable:$true] %s646
      %s648 = sshll.u32 %s2, 4
      %s649 = int_to_ptr.hbm [resolvable:$true] %s648
      %654 = dma.vmem_to_hbm [thread:$0]  %s647, 4096, %s649, [#allocation4], 128, 128, 8
    $region21: #{tpu_custom_call.1} parent=1 // pred_fallthru
      _
    // Predicated region
    $region22: #{tpu_custom_call.1} parent=1 // pred_check
      _
    $region23: #{tpu_custom_call.1} parent=1 // pred_check_branch
      %656 = sbr.rel (0) target = $region25
    $region24: #{tpu_custom_call.1} parent=1 // pred_region
      %658 = dma.done [#allocation4], 4096
    $region25: #{tpu_custom_call.1} parent=1 // pred_fallthru
      _
    %659 = vsyncpa [#allocation3], 1
    %660 = vsyncpa [#allocation6], 1
    %661 = vsyncpa [#allocation4], 1

</llo_original>
